<compile_context>
chip_gen: v5e
topology: v5e:2x2
jax: 0.10.0
libtpu: 0.0.40
codegen_flags: <defaults>
</compile_context>

<pallas_src>
import functools

import jax
import jax.numpy as jnp
from jax.experimental import pallas as pl
from jax.experimental.pallas import tpu as pltpu


def _round_up(x, m):
    return (x + m - 1) // m * m


def _vmem_capacity_bytes():
    try:
        return int(pltpu.get_tpu_info().vmem_capacity_bytes)
    except Exception:
        return 64 << 20  # conservative (v7x-sized) fallback


def _depthwise_acc(tap, wdw_ref, kernel_size):
    """Depthwise conv on the VPU: products in the input dtype, f32 accumulation."""
    w_dw = wdw_ref[...]                                    # (c_in, K)
    acc = (w_dw[:, 0:1] * tap(0)).astype(jnp.float32)
    for k in range(1, kernel_size):
        acc = acc + w_dw[:, k:k + 1] * tap(k)
    return acc                                             # (c_in, tile_t) f32


def _pointwise_store(acc, wpw_ref, shift_ref, out_ref, *, pw_on_mxu, matmul_dtype,
                     activation):
    if pw_on_mxu:
        # 1x1 conv (channel mix) on the MXU; BN scale already folded into wpw.
        y = jnp.dot(wpw_ref[...], acc.astype(matmul_dtype),
                    preferred_element_type=jnp.float32)    # (c_out, tile_t)
    else:
        # Tiny channel counts: a sub-128 matmul wastes the MXU -> broadcast FMAs.
        w_pw = wpw_ref[...].astype(jnp.float32)            # (c_out, c_in)
        c_in = w_pw.shape[1]
        y = w_pw[:, 0:1] * acc[0:1, :]
        for ci in range(1, c_in):
            y = y + w_pw[:, ci:ci + 1] * acc[ci:ci + 1, :]
    y = y + shift_ref[...]                                 # folded biases + BN shift
    if activation:
        y = jnp.maximum(y, 0.0)
    out_ref[0] = y.astype(out_ref.dtype)


def _cell_kernel_window(xwin_ref, wdw_ref, wpw_ref, shift_ref, out_ref, *,
                        kernel_size, stride, dilation, tile_t, pw_on_mxu,
                        matmul_dtype, activation):
    # xwin_ref: (1, c_in, tile_t*stride + halo) overlapping window (single DMA).
    def tap(k):
        start = k * dilation
        if stride == 1:
            return xwin_ref[0, :, start:start + tile_t]
        # TODO(synk): stride > 1 strided lane load is not exercised by the demo.
        return xwin_ref[0, :, pl.ds(start, tile_t, stride=stride)]

    acc = _depthwise_acc(tap, wdw_ref, kernel_size)
    _pointwise_store(acc, wpw_ref, shift_ref, out_ref, pw_on_mxu=pw_on_mxu,
                     matmul_dtype=matmul_dtype, activation=activation)


def _cell_kernel_two_block(x_ref, halo_ref, wdw_ref, wpw_ref, shift_ref, out_ref,
                           xwin_ref, *, kernel_size, stride, dilation, tile_t,
                           tile_in, halo_fetch, pw_on_mxu, matmul_dtype, activation):
    # Fallback layout: stitch the main tile and its right halo into one
    # contiguous window so every tap is a plain slice of a single ref.
    xwin_ref[:, :tile_in] = x_ref[0]
    xwin_ref[:, tile_in:tile_in + halo_fetch] = halo_ref[0]

    def tap(k):
        start = k * dilation
        if stride == 1:
            return xwin_ref[:, start:start + tile_t]
        return xwin_ref[:, pl.ds(start, tile_t, stride=stride)]

    acc = _depthwise_acc(tap, wdw_ref, kernel_size)
    _pointwise_store(acc, wpw_ref, shift_ref, out_ref, pw_on_mxu=pw_on_mxu,
                     matmul_dtype=matmul_dtype, activation=activation)


_LAYOUT_CACHE = []  # first (element_window, single_buffer_weights) combo that compiled


def cell_forward(x, params, *, kernel_size, stride=1, dilation=1, activation=True,
                 tile_t=None, matmul_dtype=jnp.bfloat16):
    """x: (N, C_in, T). Returns (N, C_out, T_out). Matches PyTorch Cell (eval mode)."""
    n, c_in, t = x.shape
    w_dw, b_dw, w_pw, b_pw, gamma, beta, run_mean, run_var, eps = params
    c_out = w_pw.shape[0]

    padding = dilation * kernel_size // 2            # matches the PyTorch module
    t_out = (t + 2 * padding - dilation * (kernel_size - 1) - 1) // stride + 1

    # Pointwise placement: tiny channel counts skip the MXU.
    pw_on_mxu = (c_in * c_out) > 1024
    pw_dtype = matmul_dtype if pw_on_mxu else jnp.float32

    x_itemsize = jnp.dtype(x.dtype).itemsize
    halo = _round_up(max(dilation * (kernel_size - 1) - stride + 1, 1), 128)
    vmem_cap = _vmem_capacity_bytes()

    def vmem_estimate(tt, two_block):
        win = tt * stride + halo
        est = 2 * c_in * win * x_itemsize                           # input windows (x2 bufs)
        est += 2 * c_out * tt * x_itemsize                          # output tiles
        est += 2 * (c_in * kernel_size * x_itemsize
                    + c_out * c_in * jnp.dtype(pw_dtype).itemsize + c_out * 4)
        if two_block:
            est += c_in * win * x_itemsize                          # stitch scratch
        est += (c_in + c_out) * tt * 4                              # live f32 values
        return est

    # --- generation-aware time tiling -----------------------------------------
    if tile_t is None:
        t_pad = _round_up(t_out, 128)
        tile_cap = 1024 if vmem_cap < (100 << 20) else 2048         # v7x: 64 MiB VMEM
        tile_t = 128
        for cand in (2048, 1024, 512, 256, 128):
            if (cand <= tile_cap and cand <= t_pad
                    and vmem_estimate(cand, True) <= 0.35 * vmem_cap):
                tile_t = cand
                break
        # Keep both v7x TensorCores busy: prefer >= 2 grid points per call.
        while n * pl.cdiv(t_pad, tile_t) < 2 and tile_t > 128:
            tile_t //= 2
    assert tile_t % 128 == 0 and tile_t >= 128

    nt = pl.cdiv(t_out, tile_t)
    tile_in = tile_t * stride

    # Fallback halo block width must be a 128-multiple divisor of tile_in.
    halo_fetch = halo
    while halo_fetch <= tile_in and tile_in % halo_fetch != 0:
        halo_fetch += 128
    two_block_ok = halo_fetch <= tile_in and tile_in % halo_fetch == 0

    # Zero-pad the time axis: conv left padding plus enough on the right so every
    # tile's window stays in bounds and all blocks are 128-lane aligned.
    cover = nt * tile_in + (halo_fetch if two_block_ok else halo)
    t_total = _round_up(max(cover, t + 2 * padding), 128)
    x_padded = jnp.pad(x, ((0, 0), (0, 0), (padding, t_total - padding - t)))

    # --- fold BN (inference) + all biases into one weight and one shift ---------
    # y = (scale*W_pw) @ dwconv_nobias(x) + [scale*(W_pw@b_dw + b_pw - mean) + beta]
    f32 = jnp.float32
    inv_std = jax.lax.rsqrt(run_var.astype(f32) + eps)
    scale = gamma.astype(f32) * inv_std                              # (C_out,)
    w_fold = w_pw.reshape(c_out, c_in).astype(f32) * scale[:, None]  # (C_out, C_in)
    shift = (beta.astype(f32) - run_mean.astype(f32) * scale
             + b_pw.astype(f32) * scale + w_fold @ b_dw.astype(f32))
    shift = shift.reshape(c_out, 1)
    w_fold = w_fold.astype(pw_dtype)
    w_dw2 = w_dw.reshape(c_in, kernel_size).astype(x.dtype)          # taps in input dtype

    out_shape = jax.ShapeDtypeStruct((n, c_out, nt * tile_t), x.dtype)
    common = dict(kernel_size=kernel_size, stride=stride, dilation=dilation,
                  tile_t=tile_t, pw_on_mxu=pw_on_mxu, matmul_dtype=matmul_dtype,
                  activation=activation)

    def vmem_limit(two_block):
        cap = min(int(0.75 * vmem_cap), 100 << 20)                   # headroom on v7x
        return int(min(max(2 * vmem_estimate(tile_t, two_block), 16 << 20), cap))

    def attempt(element_window, single_buffer_weights):
        # Constant blocks are never re-fetched -> one pipeline buffer is enough.
        wkw = dict(pipeline_mode=pl.Buffered(1)) if single_buffer_weights else {}
        weight_specs = [
            pl.BlockSpec((c_in, kernel_size), lambda b, j: (0, 0), **wkw),
            pl.BlockSpec((c_out, c_in), lambda b, j: (0, 0), **wkw),
            pl.BlockSpec((c_out, 1), lambda b, j: (0, 0), **wkw),
        ]
        out_spec = pl.BlockSpec((1, c_out, tile_t), lambda b, j: (b, 0, j))

        if element_window:
            # Single overlapping window per step: element offset j*tile_in, width
            # tile_in + halo -> no duplicated halo DMA, no VMEM stitch copy.
            win = tile_in + halo
            kernel = functools.partial(_cell_kernel_window, **common)
            in_specs = [pl.BlockSpec((1, c_in, pl.Element(win)),
                                     lambda b, j: (b, 0, j * tile_in))] + weight_specs
            scratch = []
            operands = (x_padded, w_dw2, w_fold, shift)
        else:
            if not two_block_ok:
                raise ValueError("conv halo wider than the time tile; "
                                 "two-block fallback layout unavailable")
            win = tile_in + halo_fetch
            ratio = tile_in // halo_fetch
            kernel = functools.partial(_cell_kernel_two_block, tile_in=tile_in,
                                       halo_fetch=halo_fetch, **common)
            in_specs = [pl.BlockSpec((1, c_in, tile_in), lambda b, j: (b, 0, j)),
                        pl.BlockSpec((1, c_in, halo_fetch),
                                     lambda b, j: (b, 0, (j + 1) * ratio))] + weight_specs
            scratch = [pltpu.VMEM((c_in, win), x.dtype)]
            operands = (x_padded, x_padded, w_dw2, w_fold, shift)

        call = pl.pallas_call(
            kernel,
            out_shape=out_shape,
            grid_spec=pltpu.PrefetchScalarGridSpec(
                num_scalar_prefetch=0,
                grid=(n, nt),
                in_specs=in_specs,
                out_specs=out_spec,
                scratch_shapes=scratch),
            compiler_params=pltpu.CompilerParams(
                dimension_semantics=("parallel", "parallel"),
                vmem_limit_bytes=vmem_limit(not element_window)),
        )
        return call(*operands)

    layouts = [(True, True), (True, False), (False, False)]
    if _LAYOUT_CACHE:
        layouts = [_LAYOUT_CACHE[0]] + [l for l in layouts if l != _LAYOUT_CACHE[0]]
    errors = []
    for layout in layouts:
        try:
            out = attempt(*layout)
            if not _LAYOUT_CACHE or _LAYOUT_CACHE[0] != layout:
                jax.block_until_ready(out)      # surface lowering/runtime failures now
            if not _LAYOUT_CACHE:
                _LAYOUT_CACHE.append(layout)
            return out[:, :, :t_out]
        except Exception as err:                # fall back to the next layout
            errors.append(err)
    raise errors[-1]


def _reference(x, params, *, kernel_size, stride, dilation, activation):
    """Pure-JAX reference (lax conv) mirroring the PyTorch module in eval mode."""
    w_dw, b_dw, w_pw, b_pw, gamma, beta, run_mean, run_var, eps = params
    c_in = x.shape[1]
    padding = dilation * kernel_size // 2
    y = jax.lax.conv_general_dilated(
        x, w_dw, window_strides=(stride,), padding=[(padding, padding)],
        rhs_dilation=(dilation,), feature_group_count=c_in,
        dimension_numbers=("NCH", "OIH", "NCH"))
    y = y + b_dw.reshape(1, -1, 1)
    y = jax.lax.conv_general_dilated(
        y, w_pw, window_strides=(1,), padding=[(0, 0)],
        dimension_numbers=("NCH", "OIH", "NCH"))
    y = y + b_pw.reshape(1, -1, 1)
    inv_std = jax.lax.rsqrt(run_var + eps)
    y = (y - run_mean.reshape(1, -1, 1)) * inv_std.reshape(1, -1, 1)
    y = y * gamma.reshape(1, -1, 1) + beta.reshape(1, -1, 1)
    if activation:
        y = jnp.maximum(y, 0.0)
    return y


if __name__ == "__main__":
    key = jax.random.PRNGKey(0)

    def make_params(k, c_in, c_out, ksize):
        k1, k2, k3, k4, k5, k6 = jax.random.split(k, 6)
        w_dw = 0.2 * jax.random.normal(k1, (c_in, 1, ksize), dtype=jnp.float32)
        b_dw = 0.1 * jax.random.normal(k2, (c_in,), dtype=jnp.float32)
        w_pw = 0.2 * jax.random.normal(k3, (c_out, c_in, 1), dtype=jnp.float32)
        b_pw = 0.1 * jax.random.normal(k4, (c_out,), dtype=jnp.float32)
        gamma = 1.0 + 0.1 * jax.random.normal(k5, (c_out,), dtype=jnp.float32)
        beta = 0.1 * jax.random.normal(k6, (c_out,), dtype=jnp.float32)
        run_mean = 0.05 * jnp.arange(c_out, dtype=jnp.float32)
        run_var = 1.0 + 0.01 * jnp.arange(c_out, dtype=jnp.float32)
        return (w_dw, b_dw, w_pw, b_pw, gamma, beta, run_mean, run_var, 1e-5)

    kx1, kp1, kx2, kp2 = jax.random.split(key, 4)

    # Config 1: Cell(8, 16, kernel_size=3) in full f32 with an explicit tile_t=256
    # -> exercises time tiling (2 tiles per batch element), the overlapping window
    # (or halo fallback) and the small-channel VPU pointwise path; exact check.
    x1 = jax.random.normal(kx1, (2, 8, 512), dtype=jnp.float32)
    p1 = make_params(kp1, 8, 16, 3)
    out1 = jax.block_until_ready(
        cell_forward(x1, p1, kernel_size=3, stride=1, dilation=1,
                     activation=True, tile_t=256, matmul_dtype=jnp.float32))
    ref1 = _reference(x1, p1, kernel_size=3, stride=1, dilation=1, activation=True)
    assert out1.shape == ref1.shape, (out1.shape, ref1.shape)
    assert jnp.allclose(out1, ref1, atol=1e-4, rtol=1e-4), "config-1 mismatch"

    # Config 2: Cell(64, 32, kernel_size=7, dilation=2, activation=False) with bf16
    # activations -> default bf16 MXU path, bf16 depthwise taps, auto tile picker,
    # non-multiple-of-128 T (remainder tile sliced off).
    x2 = jax.random.normal(kx2, (1, 64, 300), dtype=jnp.float32).astype(jnp.bfloat16)
    p2 = make_params(kp2, 64, 32, 7)
    out2 = jax.block_until_ready(
        cell_forward(x2, p2, kernel_size=7, stride=1, dilation=2, activation=False))
    ref2 = _reference(x2.astype(jnp.float32), p2, kernel_size=7, stride=1, dilation=2,
                      activation=False)
    assert out2.shape == ref2.shape, (out2.shape, ref2.shape)
    out2f = out2.astype(jnp.float32)
    rel_err = jnp.linalg.norm(out2f - ref2) / jnp.linalg.norm(ref2)
    assert rel_err < 3e-2, ("config-2 mismatch", float(rel_err))
    assert jnp.allclose(out2f, ref2, atol=0.15, rtol=0.1), "config-2 outlier mismatch"

    print("KERNEL_OK")
</pallas_src>

<mosaic_0001>
module attributes {stable_mosaic.version = 11 : i64} {
  func.func @_cell_kernel_two_block(%arg0: i32, %arg1: i32, %arg2: memref<1x8x256xf32, #tpu.memory_space<vmem>>, %arg3: memref<1x8x128xf32, #tpu.memory_space<vmem>>, %arg4: memref<8x3xf32, #tpu.memory_space<vmem>>, %arg5: memref<16x8xf32, #tpu.memory_space<vmem>>, %arg6: memref<16x1xf32, #tpu.memory_space<vmem>>, %arg7: memref<1x16x256xf32, #tpu.memory_space<vmem>>, %arg8: memref<8x384xf32, #tpu.memory_space<vmem>>) attributes {dimension_semantics = [#tpu.dimension_semantics<parallel>, #tpu.dimension_semantics<parallel>], iteration_bounds = array<i64: 2, 2>, scalar_prefetch = 0 : i64, scratch_operands = 1 : i64, tpu.core_type = #tpu.core_type<tc>, window_params = [{transform_indices = @transform_0, window_bounds = array<i64: 1, 8, 256>}, {transform_indices = @transform_1, window_bounds = array<i64: 1, 8, 128>}, {pipeline_mode = #tpu.pipeline_mode<synchronous>, transform_indices = @transform_2, window_bounds = array<i64: 8, 3>}, {pipeline_mode = #tpu.pipeline_mode<synchronous>, transform_indices = @transform_3, window_bounds = array<i64: 16, 8>}, {pipeline_mode = #tpu.pipeline_mode<synchronous>, transform_indices = @transform_4, window_bounds = array<i64: 16, 1>}, {transform_indices = @transform_5, window_bounds = array<i64: 1, 16, 256>}]} {
    %c0 = arith.constant 0 : index
    %c0_0 = arith.constant 0 : index
    %c0_1 = arith.constant 0 : index
    %0 = vector.load %arg2[%c0, %c0_0, %c0_1] : memref<1x8x256xf32, #tpu.memory_space<vmem>>, vector<1x8x256xf32>
    %1 = vector.shape_cast %0 : vector<1x8x256xf32> to vector<8x256xf32>
    %c0_2 = arith.constant 0 : index
    %c0_3 = arith.constant 0 : index
    %2 = vector.load %arg8[%c0_2, %c0_3] : memref<8x384xf32, #tpu.memory_space<vmem>>, vector<8x256xf32>
    tpu.vector_store %arg8[%c0_2, %c0_3], %1 {strides = array<i32>} : memref<8x384xf32, #tpu.memory_space<vmem>>, vector<8x256xf32>,
    %c0_4 = arith.constant 0 : index
    %c0_5 = arith.constant 0 : index
    %c0_6 = arith.constant 0 : index
    %3 = vector.load %arg3[%c0_4, %c0_5, %c0_6] : memref<1x8x128xf32, #tpu.memory_space<vmem>>, vector<1x8x128xf32>
    %4 = vector.shape_cast %3 : vector<1x8x128xf32> to vector<8x128xf32>
    %c0_7 = arith.constant 0 : index
    %c256 = arith.constant 256 : index
    %5 = vector.load %arg8[%c0_7, %c256] : memref<8x384xf32, #tpu.memory_space<vmem>>, vector<8x128xf32>
    tpu.vector_store %arg8[%c0_7, %c256], %4 {strides = array<i32>} : memref<8x384xf32, #tpu.memory_space<vmem>>, vector<8x128xf32>,
    %c0_8 = arith.constant 0 : index
    %c0_9 = arith.constant 0 : index
    %6 = vector.load %arg4[%c0_8, %c0_9] : memref<8x3xf32, #tpu.memory_space<vmem>>, vector<8x3xf32>
    %7 = vector.extract_strided_slice %6 {offsets = [0, 0], sizes = [8, 1], strides = [1, 1]} : vector<8x3xf32> to vector<8x1xf32>
    %c0_10 = arith.constant 0 : index
    %c0_11 = arith.constant 0 : index
    %8 = vector.load %arg8[%c0_10, %c0_11] : memref<8x384xf32, #tpu.memory_space<vmem>>, vector<8x256xf32>
    %9 = vector.broadcast %7 : vector<8x1xf32> to vector<8x256xf32>
    %10 = arith.mulf %9, %8 : vector<8x256xf32>
    %11 = vector.extract_strided_slice %6 {offsets = [0, 1], sizes = [8, 1], strides = [1, 1]} : vector<8x3xf32> to vector<8x1xf32>
    %c0_12 = arith.constant 0 : index
    %c1 = arith.constant 1 : index
    %12 = vector.load %arg8[%c0_12, %c1] : memref<8x384xf32, #tpu.memory_space<vmem>>, vector<8x256xf32>
    %13 = vector.broadcast %11 : vector<8x1xf32> to vector<8x256xf32>
    %14 = arith.mulf %13, %12 : vector<8x256xf32>
    %15 = arith.addf %10, %14 : vector<8x256xf32>
    %16 = vector.extract_strided_slice %6 {offsets = [0, 2], sizes = [8, 1], strides = [1, 1]} : vector<8x3xf32> to vector<8x1xf32>
    %c0_13 = arith.constant 0 : index
    %c2 = arith.constant 2 : index
    %17 = vector.load %arg8[%c0_13, %c2] : memref<8x384xf32, #tpu.memory_space<vmem>>, vector<8x256xf32>
    %18 = vector.broadcast %16 : vector<8x1xf32> to vector<8x256xf32>
    %19 = arith.mulf %18, %17 : vector<8x256xf32>
    %20 = arith.addf %15, %19 : vector<8x256xf32>
    %c0_14 = arith.constant 0 : index
    %c0_15 = arith.constant 0 : index
    %21 = vector.load %arg5[%c0_14, %c0_15] : memref<16x8xf32, #tpu.memory_space<vmem>>, vector<16x8xf32>
    %22 = vector.extract_strided_slice %21 {offsets = [0, 0], sizes = [16, 1], strides = [1, 1]} : vector<16x8xf32> to vector<16x1xf32>
    %23 = vector.extract_strided_slice %20 {offsets = [0, 0], sizes = [1, 256], strides = [1, 1]} : vector<8x256xf32> to vector<1x256xf32>
    %24 = vector.broadcast %22 : vector<16x1xf32> to vector<16x256xf32>
    %25 = vector.broadcast %23 : vector<1x256xf32> to vector<16x256xf32>
    %26 = arith.mulf %24, %25 : vector<16x256xf32>
    %27 = vector.extract_strided_slice %21 {offsets = [0, 1], sizes = [16, 1], strides = [1, 1]} : vector<16x8xf32> to vector<16x1xf32>
    %28 = vector.extract_strided_slice %20 {offsets = [1, 0], sizes = [1, 256], strides = [1, 1]} : vector<8x256xf32> to vector<1x256xf32>
    %29 = vector.broadcast %27 : vector<16x1xf32> to vector<16x256xf32>
    %30 = vector.broadcast %28 : vector<1x256xf32> to vector<16x256xf32>
    %31 = arith.mulf %29, %30 : vector<16x256xf32>
    %32 = arith.addf %26, %31 : vector<16x256xf32>
    %33 = vector.extract_strided_slice %21 {offsets = [0, 2], sizes = [16, 1], strides = [1, 1]} : vector<16x8xf32> to vector<16x1xf32>
    %34 = vector.extract_strided_slice %20 {offsets = [2, 0], sizes = [1, 256], strides = [1, 1]} : vector<8x256xf32> to vector<1x256xf32>
    %35 = vector.broadcast %33 : vector<16x1xf32> to vector<16x256xf32>
    %36 = vector.broadcast %34 : vector<1x256xf32> to vector<16x256xf32>
    %37 = arith.mulf %35, %36 : vector<16x256xf32>
    %38 = arith.addf %32, %37 : vector<16x256xf32>
    %39 = vector.extract_strided_slice %21 {offsets = [0, 3], sizes = [16, 1], strides = [1, 1]} : vector<16x8xf32> to vector<16x1xf32>
    %40 = vector.extract_strided_slice %20 {offsets = [3, 0], sizes = [1, 256], strides = [1, 1]} : vector<8x256xf32> to vector<1x256xf32>
    %41 = vector.broadcast %39 : vector<16x1xf32> to vector<16x256xf32>
    %42 = vector.broadcast %40 : vector<1x256xf32> to vector<16x256xf32>
    %43 = arith.mulf %41, %42 : vector<16x256xf32>
    %44 = arith.addf %38, %43 : vector<16x256xf32>
    %45 = vector.extract_strided_slice %21 {offsets = [0, 4], sizes = [16, 1], strides = [1, 1]} : vector<16x8xf32> to vector<16x1xf32>
    %46 = vector.extract_strided_slice %20 {offsets = [4, 0], sizes = [1, 256], strides = [1, 1]} : vector<8x256xf32> to vector<1x256xf32>
    %47 = vector.broadcast %45 : vector<16x1xf32> to vector<16x256xf32>
    %48 = vector.broadcast %46 : vector<1x256xf32> to vector<16x256xf32>
    %49 = arith.mulf %47, %48 : vector<16x256xf32>
    %50 = arith.addf %44, %49 : vector<16x256xf32>
    %51 = vector.extract_strided_slice %21 {offsets = [0, 5], sizes = [16, 1], strides = [1, 1]} : vector<16x8xf32> to vector<16x1xf32>
    %52 = vector.extract_strided_slice %20 {offsets = [5, 0], sizes = [1, 256], strides = [1, 1]} : vector<8x256xf32> to vector<1x256xf32>
    %53 = vector.broadcast %51 : vector<16x1xf32> to vector<16x256xf32>
    %54 = vector.broadcast %52 : vector<1x256xf32> to vector<16x256xf32>
    %55 = arith.mulf %53, %54 : vector<16x256xf32>
    %56 = arith.addf %50, %55 : vector<16x256xf32>
    %57 = vector.extract_strided_slice %21 {offsets = [0, 6], sizes = [16, 1], strides = [1, 1]} : vector<16x8xf32> to vector<16x1xf32>
    %58 = vector.extract_strided_slice %20 {offsets = [6, 0], sizes = [1, 256], strides = [1, 1]} : vector<8x256xf32> to vector<1x256xf32>
    %59 = vector.broadcast %57 : vector<16x1xf32> to vector<16x256xf32>
    %60 = vector.broadcast %58 : vector<1x256xf32> to vector<16x256xf32>
    %61 = arith.mulf %59, %60 : vector<16x256xf32>
    %62 = arith.addf %56, %61 : vector<16x256xf32>
    %63 = vector.extract_strided_slice %21 {offsets = [0, 7], sizes = [16, 1], strides = [1, 1]} : vector<16x8xf32> to vector<16x1xf32>
    %64 = vector.extract_strided_slice %20 {offsets = [7, 0], sizes = [1, 256], strides = [1, 1]} : vector<8x256xf32> to vector<1x256xf32>
    %65 = vector.broadcast %63 : vector<16x1xf32> to vector<16x256xf32>
    %66 = vector.broadcast %64 : vector<1x256xf32> to vector<16x256xf32>
    %67 = arith.mulf %65, %66 : vector<16x256xf32>
    %68 = arith.addf %62, %67 : vector<16x256xf32>
    %c0_16 = arith.constant 0 : index
    %c0_17 = arith.constant 0 : index
    %69 = vector.load %arg6[%c0_16, %c0_17] : memref<16x1xf32, #tpu.memory_space<vmem>>, vector<16x1xf32>
    %70 = vector.broadcast %69 : vector<16x1xf32> to vector<16x256xf32>
    %71 = arith.addf %68, %70 : vector<16x256xf32>
    %cst = arith.constant 0.000000e+00 : f32
    %72 = vector.broadcast %cst : f32 to vector<16x256xf32>
    %73 = arith.maximumf %71, %72 : vector<16x256xf32>
    %c0_18 = arith.constant 0 : index
    %c0_19 = arith.constant 0 : index
    %c0_20 = arith.constant 0 : index
    %74 = vector.load %arg7[%c0_18, %c0_19, %c0_20] : memref<1x16x256xf32, #tpu.memory_space<vmem>>, vector<1x16x256xf32>
    %75 = vector.shape_cast %74 : vector<1x16x256xf32> to vector<16x256xf32>
    %76 = vector.shape_cast %73 : vector<16x256xf32> to vector<1x16x256xf32>
    tpu.vector_store %arg7[%c0_18, %c0_19, %c0_20], %76 {strides = array<i32>} : memref<1x16x256xf32, #tpu.memory_space<vmem>>, vector<1x16x256xf32>,
    return
  }
  func.func @transform_0(%arg0: i32, %arg1: i32) -> (i32, i32, i32) {
    %c0_i32 = arith.constant 0 : i32
    %c0_i32_0 = arith.constant 0 : i32
    return %arg0, %c0_i32, %arg1 : i32, i32, i32
  }
  func.func @transform_1(%arg0: i32, %arg1: i32) -> (i32, i32, i32) {
    %c1_i32 = arith.constant 1 : i32
    %0 = arith.addi %arg1, %c1_i32 : i32
    %c2_i32 = arith.constant 2 : i32
    %1 = arith.muli %0, %c2_i32 : i32
    %c0_i32 = arith.constant 0 : i32
    %c0_i32_0 = arith.constant 0 : i32
    return %arg0, %c0_i32, %1 : i32, i32, i32
  }
  func.func @transform_2(%arg0: i32, %arg1: i32) -> (i32, i32) {
    %c0_i32 = arith.constant 0 : i32
    %c0_i32_0 = arith.constant 0 : i32
    %c0_i32_1 = arith.constant 0 : i32
    return %c0_i32, %c0_i32_0 : i32, i32
  }
  func.func @transform_3(%arg0: i32, %arg1: i32) -> (i32, i32) {
    %c0_i32 = arith.constant 0 : i32
    %c0_i32_0 = arith.constant 0 : i32
    %c0_i32_1 = arith.constant 0 : i32
    return %c0_i32, %c0_i32_0 : i32, i32
  }
  func.func @transform_4(%arg0: i32, %arg1: i32) -> (i32, i32) {
    %c0_i32 = arith.constant 0 : i32
    %c0_i32_0 = arith.constant 0 : i32
    %c0_i32_1 = arith.constant 0 : i32
    return %c0_i32, %c0_i32_0 : i32, i32
  }
  func.func @transform_5(%arg0: i32, %arg1: i32) -> (i32, i32, i32) {
    %c0_i32 = arith.constant 0 : i32
    %c0_i32_0 = arith.constant 0 : i32
    return %arg0, %c0_i32, %arg1 : i32, i32, i32
  }
}

</mosaic_0001>

<llo_original>
// kernel: tpu_custom_call.1
$region0: #{tpu_custom_call.1}
  #allocation0 [shape = 'u32[]', space=smem, size = 0x4, offset = 0x4, fixed_abs, tag = 'smem constant byte address 0x4 - core index']
  #allocation1 [shape = 'u32[72,128]{1,0:T(1,128)}', space=vmem, size = 0x9000, scoped, tag = 'internal scratch']
  #allocation2 [shape = 'f32[8,384]{1,0:T(8,128)}', space=vmem, size = 0x3000, scoped, tag = 'scratch operand']
  %s0 = inlined_call_operand.hbm [shape: f32[2,8,640], index: 0, kind: input, shape index: {}]
  %s1 = inlined_call_operand.hbm [shape: f32[2,8,640], index: 1, kind: input, shape index: {}]
  %s2 = inlined_call_operand.vmem [shape: f32[8,3], index: 2, kind: input, shape index: {}]
  %s3 = inlined_call_operand.vmem [shape: f32[16,8], index: 3, kind: input, shape index: {}]
  %s4 = inlined_call_operand.vmem [shape: f32[16,1], index: 4, kind: input, shape index: {}]
  %s5 = inlined_call_operand.hbm [shape: f32[2,16,512], index: 5, kind: output, shape index: {}]
  %s6 = sld [smem:[#allocation0]]
  $region61: #{tpu_custom_call.1} parent=0
    _
  %s8 = ssub.s32 1, %s6
  %s9 = scalar_select 0, %s8, %s6
  $region1: #{tpu_custom_call.1} parent=0
    #allocation3 [shape = 'u8[16384]{0}', space=vmem, size = 0x4000, scoped, tag = 'input window, operand 0']
    #allocation4 [shape = 's32[2]{0}', space=sflag, size = 0x8, scoped, tag = 'scoped memory for tpu_custom_call.1']
    #allocation5 [shape = 's32[2]{0}', space=sflag, size = 0x8, scoped, tag = 'scoped memory for tpu_custom_call.1']
    #allocation6 [shape = 'u8[8192]{0}', space=vmem, size = 0x2000, scoped, tag = 'input window, operand 1']
    #allocation7 [shape = 's32[2]{0}', space=sflag, size = 0x8, scoped, tag = 'scoped memory for tpu_custom_call.1']
    #allocation8 [shape = 'u8[32768]{0}', space=vmem, size = 0x8000, scoped, tag = 'output window, operand 0']
    %10 = vsyncpa [#allocation4], 0
    %s11 = scalar_lea.sflag [#allocation4], 1
    %12 = vsyncpa %s11, 0
    %13 = vsyncpa [#allocation7], 0
    %s14 = scalar_lea.sflag [#allocation7], 1
    %15 = vsyncpa %s14, 0
    %16 = vsyncpa [#allocation5], 0
    %s17 = scalar_lea.sflag [#allocation5], 1
    %18 = vsyncpa %s17, 0
    loop: start=0, step=1, limit=6
    $region2: #{tpu_custom_call.1} parent=1 // loop_pre_header
      _
    $region3: #{tpu_custom_call.1} parent=1 // loop_header
      %s20 = sphi 0, %s24
      %p21 = scmp.ge.s32.totalorder %s20, 6
      %s27 = sphi 0, %s39
      %s28 = sphi 0, %s35
      %s29 = sphi 0, %s27
      %s30 = sphi 0, %s28
      %s31 = sphi 0, %s29
      %s32 = sphi 0, %s30
      %s44 = sphi 0, %s46
      %s47 = sphi 0, %s44
      %s48 = sphi 0, %s47
      %s64 = sphi 0, %s48
      %s76 = sphi 0, %s78
      %s79 = sphi 0, %s76
      %s80 = sphi 0, %s79
      %s96 = sphi 0, %s80
      %s100 = sphi 0, %s100
      %s102 = sphi 0, %s100
      %s103 = sphi 0, %s102
      %s117 = sphi 0, %s103
      %s121 = sphi 0, %s121
      %s123 = sphi 0, %s121
      %s124 = sphi 0, %s123
      %s138 = sphi 0, %s124
      %s142 = sphi 0, %s142
      %s144 = sphi 0, %s142
      %s145 = sphi 0, %s144
      %s159 = sphi 0, %s145
      %s167 = sphi 0, %s169
      %s170 = sphi 0, %s167
      %s171 = sphi 0, %s170
      %s187 = sphi 0, %s171
    $region4: #{tpu_custom_call.1} parent=1 // loop_header_branch
      %23 = sbr.rel (%p21) target = $region8
    $region5: #{tpu_custom_call.1} parent=1 // loop_body
      %s25 = ssub.s32 %s20, 1
      %s26 = ssub.s32 %s20, 2
      %s33 = sadd.s32 1, %s28
      %p34 = scmp.ge.s32.totalorder %s33, 2
      %s35 = scalar_select %p34, 0, %s33
      %s36 = sadd.s32 1, %s27
      %s37 = scalar_select %p34, %s36, %s27
      %p38 = scmp.ge.s32.totalorder %s37, 2
      %s39 = scalar_select %p38, 0, %s37
      %s40 = ssub.s32 %s27, %s39
      %s41 = ssub.s32 %s28, %s35
      %s42 = sor.u32 %s40, %s41
      %p43 = scmp.eq.s32.totalorder %s42, 0
      %s45 = sadd.s32 %s44, 1
      %s46 = scalar_select %p43, %s44, %s45
      %p49 = pneg %p43
      %p50 = scmp.eq.s32.totalorder %s20, 3
      %p51 = por %p49, %p50
      %p52 = scmp.ne.s32.totalorder %s44, %s47
      %p53 = scmp.eq.s32.totalorder %s20, 0
      %p54 = por %p52, %p53
      %p55 = scmp.ne.s32.totalorder %s44, %s47
      %p56 = scmp.eq.s32.totalorder %s25, 3
      %p57 = por %p55, %p56
      %p58 = scmp.ne.s32.totalorder %s47, %s48
      %p59 = scmp.eq.s32.totalorder %s25, 0
      %p60 = por %p58, %p59
      %p61 = scmp.ne.s32.totalorder %s47, %s48
      %p62 = scmp.eq.s32.totalorder %s26, 3
      %p63 = por %p61, %p62
      %p65 = scmp.ne.s32.totalorder %s48, %s64
      %p66 = scmp.eq.s32.totalorder %s26, 0
      %p67 = por %p65, %p66
      %s68 = sadd.s32 %s28, 1
      %s69 = smul.u32 %s68, 2
      %s70 = sadd.s32 %s35, 1
      %s71 = smul.u32 %s70, 2
      %s72 = ssub.s32 %s27, %s39
      %s73 = ssub.s32 %s69, %s71
      %s74 = sor.u32 %s72, %s73
      %p75 = scmp.eq.s32.totalorder %s74, 0
      %s77 = sadd.s32 %s76, 1
      %s78 = scalar_select %p75, %s76, %s77
      %p81 = pneg %p75
      %p82 = scmp.eq.s32.totalorder %s20, 3
      %p83 = por %p81, %p82
      %p84 = scmp.ne.s32.totalorder %s76, %s79
      %p85 = scmp.eq.s32.totalorder %s20, 0
      %p86 = por %p84, %p85
      %p87 = scmp.ne.s32.totalorder %s76, %s79
      %p88 = scmp.eq.s32.totalorder %s25, 3
      %p89 = por %p87, %p88
      %p90 = scmp.ne.s32.totalorder %s79, %s80
      %p91 = scmp.eq.s32.totalorder %s25, 0
      %p92 = por %p90, %p91
      %p93 = scmp.ne.s32.totalorder %s79, %s80
      %p94 = scmp.eq.s32.totalorder %s26, 3
      %p95 = por %p93, %p94
      %p97 = scmp.ne.s32.totalorder %s80, %s96
      %p98 = scmp.eq.s32.totalorder %s26, 0
      %p99 = por %p97, %p98
      %s101 = sadd.s32 %s100, 1
      %p104 = scmp.eq.s32.totalorder %s20, 3
      %p105 = scmp.ne.s32.totalorder %s100, %s102
      %p106 = scmp.eq.s32.totalorder %s20, 0
      %p107 = por %p105, %p106
      %p108 = scmp.ne.s32.totalorder %s100, %s102
      %p109 = scmp.eq.s32.totalorder %s25, 3
      %p110 = por %p108, %p109
      %p111 = scmp.ne.s32.totalorder %s102, %s103
      %p112 = scmp.eq.s32.totalorder %s25, 0
      %p113 = por %p111, %p112
      %p114 = scmp.ne.s32.totalorder %s102, %s103
      %p115 = scmp.eq.s32.totalorder %s26, 3
      %p116 = por %p114, %p115
      %p118 = scmp.ne.s32.totalorder %s103, %s117
      %p119 = scmp.eq.s32.totalorder %s26, 0
      %p120 = por %p118, %p119
      %s122 = sadd.s32 %s121, 1
      %p125 = scmp.eq.s32.totalorder %s20, 3
      %p126 = scmp.ne.s32.totalorder %s121, %s123
      %p127 = scmp.eq.s32.totalorder %s20, 0
      %p128 = por %p126, %p127
      %p129 = scmp.ne.s32.totalorder %s121, %s123
      %p130 = scmp.eq.s32.totalorder %s25, 3
      %p131 = por %p129, %p130
      %p132 = scmp.ne.s32.totalorder %s123, %s124
      %p133 = scmp.eq.s32.totalorder %s25, 0
      %p134 = por %p132, %p133
      %p135 = scmp.ne.s32.totalorder %s123, %s124
      %p136 = scmp.eq.s32.totalorder %s26, 3
      %p137 = por %p135, %p136
      %p139 = scmp.ne.s32.totalorder %s124, %s138
      %p140 = scmp.eq.s32.totalorder %s26, 0
      %p141 = por %p139, %p140
      %s143 = sadd.s32 %s142, 1
      %p146 = scmp.eq.s32.totalorder %s20, 3
      %p147 = scmp.ne.s32.totalorder %s142, %s144
      %p148 = scmp.eq.s32.totalorder %s20, 0
      %p149 = por %p147, %p148
      %p150 = scmp.ne.s32.totalorder %s142, %s144
      %p151 = scmp.eq.s32.totalorder %s25, 3
      %p152 = por %p150, %p151
      %p153 = scmp.ne.s32.totalorder %s144, %s145
      %p154 = scmp.eq.s32.totalorder %s25, 0
      %p155 = por %p153, %p154
      %p156 = scmp.ne.s32.totalorder %s144, %s145
      %p157 = scmp.eq.s32.totalorder %s26, 3
      %p158 = por %p156, %p157
      %p160 = scmp.ne.s32.totalorder %s145, %s159
      %p161 = scmp.eq.s32.totalorder %s26, 0
      %p162 = por %p160, %p161
      %s163 = ssub.s32 %s27, %s39
      %s164 = ssub.s32 %s28, %s35
      %s165 = sor.u32 %s163, %s164
      %p166 = scmp.eq.s32.totalorder %s165, 0
      %s168 = sadd.s32 %s167, 1
      %s169 = scalar_select %p166, %s167, %s168
      %p172 = pneg %p166
      %p173 = scmp.eq.s32.totalorder %s20, 3
      %p174 = por %p172, %p173
      %p175 = scmp.ne.s32.totalorder %s167, %s170
      %p176 = scmp.eq.s32.totalorder %s20, 0
      %p177 = por %p175, %p176
      %p178 = scmp.ne.s32.totalorder %s167, %s170
      %p179 = scmp.eq.s32.totalorder %s25, 3
      %p180 = por %p178, %p179
      %p181 = scmp.ne.s32.totalorder %s170, %s171
      %p182 = scmp.eq.s32.totalorder %s25, 0
      %p183 = por %p181, %p182
      %p184 = scmp.ne.s32.totalorder %s170, %s171
      %p185 = scmp.eq.s32.totalorder %s26, 3
      %p186 = por %p184, %p185
      %p188 = scmp.ne.s32.totalorder %s171, %s187
      %p189 = scmp.eq.s32.totalorder %s26, 0
      %p190 = por %p188, %p189
      %p191 = scmp.le.s32.totalorder 1, %s20
      %p192 = scmp.lt.s32.totalorder %s20, 5
      %p193 = pnand %p191, %p192
      %p194 = pneg %p193
      // Predicated region
      $region9: #{tpu_custom_call.1} parent=5 // pred_check
        _
      $region10: #{tpu_custom_call.1} parent=5 // pred_check_branch
        %196 = sbr.rel (%p193) target = $region12
      $region11: #{tpu_custom_call.1} parent=5 // pred_region
        %s197 = ssub.s32 %s20, 1
        // Predicated region
        $region13: #{tpu_custom_call.1} parent=11 // pred_check
          %p198 = pneg %p113
        $region14: #{tpu_custom_call.1} parent=11 // pred_check_branch
          %200 = sbr.rel (%p198) target = $region16
        $region15: #{tpu_custom_call.1} parent=11 // pred_region
          _
        $region16: #{tpu_custom_call.1} parent=11 // pred_fallthru
          _
        // Predicated region
        $region17: #{tpu_custom_call.1} parent=11 // pred_check
          %p201 = pneg %p134
        $region18: #{tpu_custom_call.1} parent=11 // pred_check_branch
          %203 = sbr.rel (%p201) target = $region20
        $region19: #{tpu_custom_call.1} parent=11 // pred_region
          _
        $region20: #{tpu_custom_call.1} parent=11 // pred_fallthru
          _
        // Predicated region
        $region21: #{tpu_custom_call.1} parent=11 // pred_check
          %p204 = pneg %p155
        $region22: #{tpu_custom_call.1} parent=11 // pred_check_branch
          %206 = sbr.rel (%p204) target = $region24
        $region23: #{tpu_custom_call.1} parent=11 // pred_region
          _
        $region24: #{tpu_custom_call.1} parent=11 // pred_fallthru
          _
      $region12: #{tpu_custom_call.1} parent=5 // pred_fallthru
        _
      %p207 = scmp.lt.s32.totalorder %s20, 4
      // Predicated region
      $region25: #{tpu_custom_call.1} parent=5 // pred_check
        %p208 = pneg %p207
      $region26: #{tpu_custom_call.1} parent=5 // pred_check_branch
        %210 = sbr.rel (%p208) target = $region28
      $region27: #{tpu_custom_call.1} parent=5 // pred_region
        // Predicated region
        $region29: #{tpu_custom_call.1} parent=27 // pred_check
          %p211 = pneg %p54
        $region30: #{tpu_custom_call.1} parent=27 // pred_check_branch
          %213 = sbr.rel (%p211) target = $region32
        $region31: #{tpu_custom_call.1} parent=27 // pred_region
          %s214 = sand.u32 %s44, 1
          %s215 = scalar_lea.sflag [#allocation4], %s214
          %s216 = sand.u32 %s44, 1
          %s217 = smul.addr %s216, 16
          %s218 = scalar_lea.vmem [#allocation3], %s217
          %s219 = smul.u32 2, %s28
          %s220 = ssub.s32 5, %s219
          %p221 = scmp.lt.s32.totalorder %s220, 2
          %s222 = scalar_select %p221, %s220, 2
          %s223 = smul.u32 8, %s222
          %s224 = ssub.s32 16, %s223
          %s225 = sshll.u32 %s224, 4
          %226 = vsyncadd %s215, %s225
          %p227 = scmp.ne.s32.totalorder 0, %s223
          %s228 = smul.addr %s27, 5
          %s229 = sadd.s32 %s219, %s228
          %s230 = smul.addr %s229, 8
          %s231 = scalar_lea.hbm %s0, %s230
          %s232 = smul.u32 %s222, 8
          %s233 = sshll.u32 %s232, 4
          %s234 = sshll.u32 %s231, 4
          %s235 = int_to_ptr.hbm [resolvable:$true] %s234
          %s236 = sshll.u32 %s218, 4
          %s237 = int_to_ptr.vmem [resolvable:$true] %s236
          %239 = dma.hbm_to_vmem [thread:$0]  (%p227), %s235, %s233, %s237, %s215
        $region32: #{tpu_custom_call.1} parent=27 // pred_fallthru
          _
        // Predicated region
        $region33: #{tpu_custom_call.1} parent=27 // pred_check
          %p240 = pneg %p86
        $region34: #{tpu_custom_call.1} parent=27 // pred_check_branch
          %242 = sbr.rel (%p240) target = $region36
        $region35: #{tpu_custom_call.1} parent=27 // pred_region
          %s243 = sand.u32 %s76, 1
          %s244 = scalar_lea.sflag [#allocation7], %s243
          %s245 = sand.u32 %s76, 1
          %s246 = smul.addr %s245, 8
          %s247 = scalar_lea.vmem [#allocation6], %s246
          %s248 = sadd.s32 %s28, 1
          %s249 = smul.u32 %s248, 2
          %251 = vsyncadd %s244, 0
          %s252 = smul.addr %s27, 5
          %s253 = sadd.s32 %s249, %s252
          %s254 = smul.addr %s253, 8
          %s255 = scalar_lea.hbm %s1, %s254
          %s257 = sshll.u32 %s255, 4
          %s258 = int_to_ptr.hbm [resolvable:$true] %s257
          %s259 = sshll.u32 %s247, 4
          %s260 = int_to_ptr.vmem [resolvable:$true] %s259
          %262 = dma.hbm_to_vmem [thread:$0]  %s258, 128, %s260, %s244
        $region36: #{tpu_custom_call.1} parent=27 // pred_fallthru
          _
      $region28: #{tpu_custom_call.1} parent=5 // pred_fallthru
        _
      %p263 = scmp.le.s32.totalorder 1, %s20
      %p264 = scmp.lt.s32.totalorder %s20, 5
      %p265 = pnand %p263, %p264
      %p266 = pneg %p265
      // Predicated region
      $region37: #{tpu_custom_call.1} parent=5 // pred_check
        _
      $region38: #{tpu_custom_call.1} parent=5 // pred_check_branch
        %268 = sbr.rel (%p265) target = $region40
      $region39: #{tpu_custom_call.1} parent=5 // pred_region
        %s269 = ssub.s32 %s20, 1
        %s270 = sand.u32 %s47, 1
        %s271 = scalar_lea.sflag [#allocation4], %s270
        %s272 = sand.u32 %s47, 1
        %s273 = smul.addr %s272, 16
        %s274 = scalar_lea.vmem [#allocation3], %s273
        // Predicated region
        $region41: #{tpu_custom_call.1} parent=39 // pred_check
          %p275 = pneg %p60
        $region42: #{tpu_custom_call.1} parent=39 // pred_check_branch
          %277 = sbr.rel (%p275) target = $region44
        $region43: #{tpu_custom_call.1} parent=39 // pred_region
          %279 = dma.done %s271, 256
        $region44: #{tpu_custom_call.1} parent=39 // pred_fallthru
          _
        %s280 = sand.u32 %s79, 1
        %s281 = scalar_lea.sflag [#allocation7], %s280
        %s282 = sand.u32 %s79, 1
        %s283 = smul.addr %s282, 8
        %s284 = scalar_lea.vmem [#allocation6], %s283
        // Predicated region
        $region45: #{tpu_custom_call.1} parent=39 // pred_check
          %p285 = pneg %p92
        $region46: #{tpu_custom_call.1} parent=39 // pred_check_branch
          %287 = sbr.rel (%p285) target = $region48
        $region47: #{tpu_custom_call.1} parent=39 // pred_region
          %289 = dma.done %s281, 128
        $region48: #{tpu_custom_call.1} parent=39 // pred_fallthru
          _
        %s290 = sand.u32 %s47, 1
        %s291 = scalar_lea.sflag [#allocation4], %s290
        %s292 = sand.u32 %s47, 1
        %s293 = smul.addr %s292, 16
        %s294 = scalar_lea.vmem [#allocation3], %s293
        %p295 = pneg %p60
        %p296 = pneg %p57
        %s297 = sand.u32 %s79, 1
        %s298 = scalar_lea.sflag [#allocation7], %s297
        %s299 = sand.u32 %s79, 1
        %s300 = smul.addr %s299, 8
        %s301 = scalar_lea.vmem [#allocation6], %s300
        %p302 = pneg %p92
        %p303 = pneg %p89
        %p304 = pneg %p113
        %p305 = pneg %p110
        %p306 = pneg %p134
        %p307 = pneg %p131
        %p308 = pneg %p155
        %p309 = pneg %p152
        %p310 = pneg %p183
        %p311 = pneg %p180
        %s312 = sand.u32 %s170, 1
        %s313 = scalar_lea.sflag [#allocation5], %s312
        %s314 = sand.u32 %s170, 1
        %s315 = smul.addr %s314, 32
        %s316 = scalar_lea.vmem [#allocation8], %s315
        %s317 = smul.u32 2, %s30
        %s318 = ssub.s32 5, %s317
        %p319 = scmp.lt.s32.totalorder %s318, 2
        %s320 = scalar_select %p319, %s318, 2
        %s321 = smul.u32 8, %s320
        %s322 = sadd.s32 %s30, 1
        %s323 = smul.u32 %s322, 2
        %s324 = smul.u32 2, %s30
        %v325 = vld [vmem:[%s274] sm:$0xff]
        %v326 = vld [vmem:[%s274 + $0x8] sm:$0xff]
        %327 = vst [vmem:[#allocation2] sm:$0xff] %v325
        %328 = vst [vmem:[#allocation2 + $0x8] sm:$0xff] %v326
        %v329 = vld [vmem:[%s284] sm:$0xff]
        %330 = vst [vmem:[#allocation2 + $0x10] sm:$0xff] %v329
        %v331 = vld [vmem:[%s2] sm:$0xff]
        %v332 = vld [vmem:[#allocation2] sm:$0xff]
        %v333 = vld [vmem:[#allocation2 + $0x8] sm:$0xff]
        %335 = vset.pattern.permute.xlu0 0
        %336 = vperm.xlu0 %335, %v331
        %v337 = vpop.permute.xlu0 %336
        %v339 = vmul.f32 %v337, %v332
        %v340 = vmul.f32 %v337, %v333
        %v341 = vld [vmem:[#allocation2] sm:$0xff]
        %v342 = vld [vmem:[#allocation2 + $0x8] sm:$0xff]
        %v343 = vld [vmem:[#allocation2 + $0x10] sm:$0xff]
        %344 = vset.pattern.permute.xlu0 1
        %345 = vperm.xlu0 %344, %v331
        %v346 = vpop.permute.xlu0 %345
        %v348 = vmul.f32 %v346, %v341
        %v349 = vmul.f32 %v346, %v342
        %v350 = vmul.f32 %v346, %v343
        %354 = vrot.lane.b32.xlu0 %v348, 127
        %v355 = vpop.permute.xlu0 %354
        %356 = vrot.lane.b32.xlu0 %v349, 127
        %v357 = vpop.permute.xlu0 %356
        %358 = vrot.lane.b32.xlu0 %v350, 127
        %v359 = vpop.permute.xlu0 %358
        %vm360 = vcmask 1039360
        %v361 = vsel %vm360, %v355, %v357
        %v362 = vsel %vm360, %v357, %v359
        %v365 = vadd.f32 %v339, %v361
        %v366 = vadd.f32 %v340, %v362
        %367 = vset.pattern.permute.xlu0 2
        %368 = vperm.xlu0 %367, %v331
        %v369 = vpop.permute.xlu0 %368
        %v371 = vmul.f32 %v369, %v341
        %v372 = vmul.f32 %v369, %v342
        %v373 = vmul.f32 %v369, %v343
        %377 = vrot.lane.b32.xlu0 %v371, 126
        %v378 = vpop.permute.xlu0 %377
        %379 = vrot.lane.b32.xlu0 %v372, 126
        %v380 = vpop.permute.xlu0 %379
        %381 = vrot.lane.b32.xlu0 %v373, 126
        %v382 = vpop.permute.xlu0 %381
        %vm383 = vcmask 1031168
        %v384 = vsel %vm383, %v378, %v380
        %v385 = vsel %vm383, %v380, %v382
        %v388 = vadd.f32 %v365, %v384
        %v389 = vadd.f32 %v366, %v385
        %v390 = vld [vmem:[%s3] sm:$0xff]
        %v391 = vld [vmem:[%s3 + $0x8] sm:$0xff]
        %393 = vset.pattern.permute.xlu0 0
        %394 = vperm.xlu0 %393, %v390
        %v395 = vpop.permute.xlu0 %394
        %398 = vset.pattern.permute.xlu0 0
        %399 = vperm.xlu0 %398, %v391
        %v400 = vpop.permute.xlu0 %399
        %v402 = vperm.slane %v388, 0
        %v403 = vperm.slane %v389, 0
        %v404 = vmul.f32 %v395, %v402
        %v405 = vmul.f32 %v395, %v403
        %v406 = vmul.f32 %v400, %v402
        %v407 = vmul.f32 %v400, %v403
        %408 = vset.pattern.permute.xlu0 1
        %409 = vperm.xlu0 %408, %v390
        %v410 = vpop.permute.xlu0 %409
        %412 = vset.pattern.permute.xlu0 1
        %413 = vperm.xlu0 %412, %v391
        %v414 = vpop.permute.xlu0 %413
        %v416 = vperm.slane %v388, 1
        %v417 = vperm.slane %v389, 1
        %v418 = vmul.f32 %v410, %v416
        %v419 = vmul.f32 %v410, %v417
        %v420 = vmul.f32 %v414, %v416
        %v421 = vmul.f32 %v414, %v417
        %v422 = vadd.f32 %v404, %v418
        %v423 = vadd.f32 %v405, %v419
        %v424 = vadd.f32 %v406, %v420
        %v425 = vadd.f32 %v407, %v421
        %426 = vset.pattern.permute.xlu0 2
        %427 = vperm.xlu0 %426, %v390
        %v428 = vpop.permute.xlu0 %427
        %430 = vset.pattern.permute.xlu0 2
        %431 = vperm.xlu0 %430, %v391
        %v432 = vpop.permute.xlu0 %431
        %v434 = vperm.slane %v388, 2
        %v435 = vperm.slane %v389, 2
        %v436 = vmul.f32 %v428, %v434
        %v437 = vmul.f32 %v428, %v435
        %v438 = vmul.f32 %v432, %v434
        %v439 = vmul.f32 %v432, %v435
        %v440 = vadd.f32 %v422, %v436
        %v441 = vadd.f32 %v423, %v437
        %v442 = vadd.f32 %v424, %v438
        %v443 = vadd.f32 %v425, %v439
        %444 = vset.pattern.permute.xlu0 3
        %445 = vperm.xlu0 %444, %v390
        %v446 = vpop.permute.xlu0 %445
        %448 = vset.pattern.permute.xlu0 3
        %449 = vperm.xlu0 %448, %v391
        %v450 = vpop.permute.xlu0 %449
        %v452 = vperm.slane %v388, 3
        %v453 = vperm.slane %v389, 3
        %v454 = vmul.f32 %v446, %v452
        %v455 = vmul.f32 %v446, %v453
        %v456 = vmul.f32 %v450, %v452
        %v457 = vmul.f32 %v450, %v453
        %v458 = vadd.f32 %v440, %v454
        %v459 = vadd.f32 %v441, %v455
        %v460 = vadd.f32 %v442, %v456
        %v461 = vadd.f32 %v443, %v457
        %462 = vset.pattern.permute.xlu0 4
        %463 = vperm.xlu0 %462, %v390
        %v464 = vpop.permute.xlu0 %463
        %466 = vset.pattern.permute.xlu0 4
        %467 = vperm.xlu0 %466, %v391
        %v468 = vpop.permute.xlu0 %467
        %v470 = vperm.slane %v388, 4
        %v471 = vperm.slane %v389, 4
        %v472 = vmul.f32 %v464, %v470
        %v473 = vmul.f32 %v464, %v471
        %v474 = vmul.f32 %v468, %v470
        %v475 = vmul.f32 %v468, %v471
        %v476 = vadd.f32 %v458, %v472
        %v477 = vadd.f32 %v459, %v473
        %v478 = vadd.f32 %v460, %v474
        %v479 = vadd.f32 %v461, %v475
        %480 = vset.pattern.permute.xlu0 5
        %481 = vperm.xlu0 %480, %v390
        %v482 = vpop.permute.xlu0 %481
        %484 = vset.pattern.permute.xlu0 5
        %485 = vperm.xlu0 %484, %v391
        %v486 = vpop.permute.xlu0 %485
        %v488 = vperm.slane %v388, 5
        %v489 = vperm.slane %v389, 5
        %v490 = vmul.f32 %v482, %v488
        %v491 = vmul.f32 %v482, %v489
        %v492 = vmul.f32 %v486, %v488
        %v493 = vmul.f32 %v486, %v489
        %v494 = vadd.f32 %v476, %v490
        %v495 = vadd.f32 %v477, %v491
        %v496 = vadd.f32 %v478, %v492
        %v497 = vadd.f32 %v479, %v493
        %498 = vset.pattern.permute.xlu0 6
        %499 = vperm.xlu0 %498, %v390
        %v500 = vpop.permute.xlu0 %499
        %502 = vset.pattern.permute.xlu0 6
        %503 = vperm.xlu0 %502, %v391
        %v504 = vpop.permute.xlu0 %503
        %v506 = vperm.slane %v388, 6
        %v507 = vperm.slane %v389, 6
        %v508 = vmul.f32 %v500, %v506
        %v509 = vmul.f32 %v500, %v507
        %v510 = vmul.f32 %v504, %v506
        %v511 = vmul.f32 %v504, %v507
        %v512 = vadd.f32 %v494, %v508
        %v513 = vadd.f32 %v495, %v509
        %v514 = vadd.f32 %v496, %v510
        %v515 = vadd.f32 %v497, %v511
        %516 = vset.pattern.permute.xlu0 7
        %517 = vperm.xlu0 %516, %v390
        %v518 = vpop.permute.xlu0 %517
        %520 = vset.pattern.permute.xlu0 7
        %521 = vperm.xlu0 %520, %v391
        %v522 = vpop.permute.xlu0 %521
        %v524 = vperm.slane %v388, 7
        %v525 = vperm.slane %v389, 7
        %v526 = vmul.f32 %v518, %v524
        %v527 = vmul.f32 %v518, %v525
        %v528 = vmul.f32 %v522, %v524
        %v529 = vmul.f32 %v522, %v525
        %v530 = vadd.f32 %v512, %v526
        %v531 = vadd.f32 %v513, %v527
        %v532 = vadd.f32 %v514, %v528
        %v533 = vadd.f32 %v515, %v529
        %v534 = vld [vmem:[%s4] sm:$0xff]
        %v535 = vld [vmem:[%s4 + $0x8] sm:$0xff]
        %537 = vset.pattern.permute.xlu0 0
        %538 = vperm.xlu0 %537, %v534
        %v539 = vpop.permute.xlu0 %538
        %542 = vset.pattern.permute.xlu0 0
        %543 = vperm.xlu0 %542, %v535
        %v544 = vpop.permute.xlu0 %543
        %v546 = vadd.f32 %v530, %v539
        %v547 = vadd.f32 %v531, %v539
        %v548 = vadd.f32 %v532, %v544
        %v549 = vadd.f32 %v533, %v544
        %v550 = vmax.f32 %v546, 0.0
        %v551 = vmax.f32 %v547, 0.0
        %v552 = vmax.f32 %v548, 0.0
        %v553 = vmax.f32 %v549, 0.0
        %554 = vst [vmem:[%s316] sm:$0xff] %v550
        %555 = vst [vmem:[%s316 + $0x8] sm:$0xff] %v551
        %556 = vst [vmem:[%s316 + $0x10] sm:$0xff] %v552
        %557 = vst [vmem:[%s316 + $0x18] sm:$0xff] %v553
        %s558 = sand.u32 %s170, 1
        %s559 = scalar_lea.sflag [#allocation5], %s558
        %s560 = sand.u32 %s170, 1
        %s561 = smul.addr %s560, 32
        %s562 = scalar_lea.vmem [#allocation8], %s561
        // Predicated region
        $region49: #{tpu_custom_call.1} parent=39 // pred_check
          %p563 = pneg %p180
        $region50: #{tpu_custom_call.1} parent=39 // pred_check_branch
          %565 = sbr.rel (%p563) target = $region52
        $region51: #{tpu_custom_call.1} parent=39 // pred_region
          %s566 = smul.u32 2, %s30
          %568 = vsyncadd %s559, 0
          %s569 = smul.addr %s29, 8
          %s570 = sadd.s32 %s566, %s569
          %s571 = smul.addr %s570, 8
          %s572 = scalar_lea.hbm %s5, %s571
          %s573 = sshll.u32 %s562, 4
          %s574 = int_to_ptr.vmem [resolvable:$true] %s573
          %s575 = sshll.u32 %s572, 4
          %s576 = int_to_ptr.hbm [resolvable:$true] %s575
          %581 = dma.vmem_to_hbm [thread:$0]  %s574, 512, %s576, %s559, 256, 512, 16
        $region52: #{tpu_custom_call.1} parent=39 // pred_fallthru
          _
      $region40: #{tpu_custom_call.1} parent=5 // pred_fallthru
        _
      %p582 = scmp.le.s32.totalorder 2, %s20
      // Predicated region
      $region53: #{tpu_custom_call.1} parent=5 // pred_check
        %p583 = pneg %p582
      $region54: #{tpu_custom_call.1} parent=5 // pred_check_branch
        %585 = sbr.rel (%p583) target = $region56
      $region55: #{tpu_custom_call.1} parent=5 // pred_region
        %s586 = ssub.s32 %s20, 2
        // Predicated region
        $region57: #{tpu_custom_call.1} parent=55 // pred_check
          %p587 = pneg %p186
        $region58: #{tpu_custom_call.1} parent=55 // pred_check_branch
          %589 = sbr.rel (%p587) target = $region60
        $region59: #{tpu_custom_call.1} parent=55 // pred_region
          %s590 = sand.u32 %s171, 1
          %s591 = scalar_lea.sflag [#allocation5], %s590
          %s592 = sand.u32 %s171, 1
          %s593 = smul.addr %s592, 32
          %s594 = scalar_lea.vmem [#allocation8], %s593
          %596 = dma.done %s591, 512
        $region60: #{tpu_custom_call.1} parent=55 // pred_fallthru
          _
      $region56: #{tpu_custom_call.1} parent=5 // pred_fallthru
        _
    $region6: #{tpu_custom_call.1} parent=1 // loop_footer
      %s24 = sadd.s32 1, %s20
    $region7: #{tpu_custom_call.1} parent=1 // loop_footer_branch
      %19 = sbr.rel target = $region3
    $region8: #{tpu_custom_call.1} parent=1 // loop_exit
      _
    %597 = vsyncpa [#allocation4], 1
    %s598 = scalar_lea.sflag [#allocation4], 1
    %599 = vsyncpa %s598, 1
    %600 = vsyncpa [#allocation7], 1
    %s601 = scalar_lea.sflag [#allocation7], 1
    %602 = vsyncpa %s601, 1
    %603 = vsyncpa [#allocation5], 1
    %s604 = scalar_lea.sflag [#allocation5], 1
    %605 = vsyncpa %s604, 1

</llo_original>
